<compile_context>
chip_gen: v6e
topology: v6e:2x2x1
jax: 0.10.0
libtpu: 0.0.40
codegen_flags: <defaults>
</compile_context>

<pallas_src>
import functools
import math

import jax
import jax.numpy as jnp
from jax.experimental import pallas as pl
from jax.experimental.pallas import tpu as pltpu

_LANE = 128


def _round_up(n, m):
    return ((n + m - 1) // m) * m


def _vmem_capacity_bytes():
    try:
        return int(pltpu.get_tpu_info().vmem_capacity_bytes)
    except Exception:
        return 64 * 1024 * 1024      # conservative fallback (v7x has 64 MiB)


def _mxu_rows_target():
    # v6e / v7x have a 256-wide MXU; v5e and older are 128-wide.
    try:
        kind = jax.devices()[0].device_kind.lower()
    except Exception:
        return 256
    for tag in ("v2", "v3", "v4", "v5"):
        if tag in kind:
            return 128
    return 256


def _self_attention_kernel(x_ref, wqkv_ref, bqkv_ref, out_ref, attn_ref,
                           *scratch, tk, nks):
    # x_ref:    (Bblk, S, D)    native dtype
    # wqkv_ref: (D, 3*Dp)       pre-transposed fused weight, q cols scaled by 1/sqrt(D)
    # bqkv_ref: (1, 3*Dp)       f32 fused bias (q bias pre-scaled)
    # out_ref:  (Bblk, S, Dp)   Dp-padded weighted features (lane-dense store)
    # attn_ref: (Bblk, S, Tk)   attention-weights tile for the current key tile
    bblk, s, d = x_ref.shape
    dp = out_ref.shape[-1]
    kidx = pl.program_id(1)

    def project_qkv():
        x2d = x_ref[...].reshape(bblk * s, d)
        qkv = jnp.dot(x2d, wqkv_ref[...], preferred_element_type=jnp.float32)
        qkv = qkv + bqkv_ref[...]                        # (Bblk*S, 3*Dp) f32
        # Full-width, 128-lane-aligned slabs: no sub-lane slicing (padded
        # lanes carry exact zeros from the zero-padded weight/bias columns).
        q = qkv[:, 0 * dp:1 * dp].reshape(bblk, s, dp)
        k = qkv[:, 1 * dp:2 * dp].reshape(bblk, s, dp)
        v = qkv[:, 2 * dp:3 * dp].reshape(bblk, s, dp)
        return q, k, v

    if nks == 1:
        # Whole key axis in one step: no scratch round-trip, no accumulator.
        q, k_tile, v_tile = project_qkv()
    else:
        q_scr, k_scr, v_scr, acc_scr = scratch

        @pl.when(kidx == 0)
        def _():
            q0, k0, v0 = project_qkv()
            q_scr[...] = q0
            k_scr[...] = k0
            v_scr[...] = v0
            acc_scr[...] = jnp.zeros_like(acc_scr)

        q = q_scr[...]
        start = pl.multiple_of(kidx * tk, tk)
        k_tile = k_scr[:, pl.ds(start, tk), :]
        v_tile = v_scr[:, pl.ds(start, tk), :]

    # Scores for this key tile; 1/sqrt(D) is already folded into q, and the
    # Dp-D padded lanes are exactly zero, so contracting over the full Dp is
    # numerically identical to contracting over D.
    scores = jnp.einsum('bqd,bkd->bqk', q, k_tile,
                        preferred_element_type=jnp.float32)    # (Bblk, S, Tk)

    # Softmax over dim=-2 (the query axis), exactly like nn.Softmax(dim=-2).
    # Each key column normalizes independently -> key tiling needs no rescale.
    m = jnp.max(scores, axis=-2, keepdims=True)
    e = jnp.exp(scores - m)
    denom = jnp.sum(e, axis=-2, keepdims=True)
    weights = e / denom         # exact divide: feeds the *returned* attention

    # Store the attn tile before the second matmul (shorter live range for
    # the (S, Tk) f32 temporaries -> less VMEM pressure on v7x).
    attn_ref[...] = weights.astype(attn_ref.dtype)

    weighted = jnp.einsum('bqk,bkd->bqd', weights, v_tile,
                          preferred_element_type=jnp.float32)  # (Bblk, S, Dp)

    if nks == 1:
        out_ref[...] = weighted.astype(out_ref.dtype)
    else:
        acc_scr[...] += weighted

        @pl.when(kidx == nks - 1)
        def _():
            out_ref[...] = acc_scr[...].astype(out_ref.dtype)


def prepare_qkv_params(wq, bq, wk, bk, wv, bv, *, dtype=None):
    """Build the fused, pre-transposed, scale-folded (D, 3*Dp) weight and the
    (1, 3*Dp) f32 bias ONCE per weight set (hoisted out of the per-call path)."""
    D = wq.shape[0]
    if dtype is None:
        dtype = wq.dtype
    Dp = _round_up(D, _LANE)
    scale = 1.0 / math.sqrt(D)

    def pad_cols(w_t):                       # (D, D) -> (D, Dp)
        return w_t if Dp == D else jnp.pad(w_t, ((0, 0), (0, Dp - D)))

    def pad_bias(b):                         # (D,) -> (Dp,)
        return b if Dp == D else jnp.pad(b, (0, Dp - D))

    w_qkv = jnp.concatenate(
        [pad_cols((wq * scale).T), pad_cols(wk.T), pad_cols(wv.T)],
        axis=1).astype(dtype)
    b_qkv = jnp.concatenate(
        [pad_bias(bq * scale), pad_bias(bk), pad_bias(bv)]
    ).reshape(1, 3 * Dp).astype(jnp.float32)
    return w_qkv, b_qkv


def self_attention_fused(x, w_qkv, b_qkv, *, block_b=None, block_k=None):
    """x: (B, S, D); w_qkv/b_qkv from prepare_qkv_params.
    Returns (weighted_features (B,S,D), attention_weights (B,S,S))."""
    B, S, D = x.shape
    dtype = x.dtype
    Dp = w_qkv.shape[1] // 3
    assert w_qkv.shape[0] == D and Dp == _round_up(D, _LANE)

    itemsize = jnp.dtype(dtype).itemsize
    cap = _vmem_capacity_bytes()
    budget = int(0.6 * cap)

    # ---- batch-fold (block_b) selection -------------------------------------
    rows_target = _mxu_rows_target()                 # fill the MXU M dimension
    cap_b = max(1, min(B, rows_target // max(S, 1)))
    divs = [d for d in range(1, B + 1) if B % d == 0 and d <= cap_b]
    best = max(divs)
    if block_b is None:
        # Prefer an even batch grid (both v7x TensorCores get equal work) as
        # long as it does not cost more than half the MXU row fill.
        even = [d for d in divs if (B // d) % 2 == 0]
        block_b = max(even) if even and max(even) * 2 >= best else best
    block_b = max(1, min(block_b, B))
    # Only fold batches if the in-kernel (Bblk,S,*) <-> (Bblk*S,*) reshapes
    # stay within packed-sublane tiles for the dtype (8 f32 / 16 bf16 / 32 i8).
    sublanes = max(8, (8 * 4) // itemsize)
    if S % sublanes != 0:
        block_b = 1
    while B % block_b:
        block_b -= 1

    # ---- key-axis tile (block_k) selection + VMEM budgeting ------------------
    def vmem_estimate(bb, tk):
        rows = bb * S
        est = 2 * rows * D * itemsize                        # x block (x2 buffers)
        est += 2 * (D * 3 * Dp * itemsize + 3 * Dp * 4)      # fused weight + bias
        est += 2 * rows * Dp * itemsize                      # out block
        est += 2 * rows * tk * itemsize                      # attn block
        est += rows * 3 * Dp * 4                             # qkv f32 temp
        est += 3 * rows * tk * 4                             # scores / e / weights temps
        est += rows * Dp * 4                                 # weighted temp
        if tk != S:
            est += 4 * rows * Dp * 4                         # q/k/v/acc scratch
        return est

    if block_k is None:
        block_k = S
        if vmem_estimate(block_b, S) > budget and S % _LANE == 0 and S > _LANE:
            for tk in range(S - _LANE, 0, -_LANE):           # largest 128-multiple divisor of S that fits
                if S % tk == 0 and vmem_estimate(block_b, tk) <= budget:
                    block_k = tk
                    break
            else:
                block_k = _LANE
    if S % block_k != 0:
        block_k = S
    # If still over budget, shrink the batch fold.
    while block_b > 1 and vmem_estimate(block_b, block_k) > budget:
        block_b -= 1
        while B % block_b:
            block_b -= 1

    grid_b = B // block_b
    grid_k = S // block_k

    # VMEM limit clamped to the actual chip capacity (64 MiB on v7x, 128 MiB v5e/v6e).
    vmem_limit = int(max(32 * 1024 * 1024, 2 * vmem_estimate(block_b, block_k)))
    vmem_limit = min(vmem_limit, int(0.9 * cap))

    kernel = functools.partial(_self_attention_kernel, tk=block_k, nks=grid_k)

    scratch_shapes = []
    if grid_k > 1:
        # q / k / v stash + f32 accumulator, resident across the key loop.
        scratch_shapes = [pltpu.VMEM((block_b, S, Dp), jnp.float32)] * 4

    out_shapes = (
        jax.ShapeDtypeStruct((B, S, Dp), dtype),   # Dp-padded (lane-dense) features
        jax.ShapeDtypeStruct((B, S, S), dtype),    # attention weights
    )

    # TODO(synk): single-buffer the constant weight/bias blocks via
    # pipeline_mode=pl.Buffered(1) once that knob is robust here; it only
    # saves one weight-sized VMEM buffer.
    out_pad, attn = pl.pallas_call(
        kernel,
        out_shape=out_shapes,
        grid_spec=pltpu.PrefetchScalarGridSpec(
            num_scalar_prefetch=0,
            grid=(grid_b, grid_k),
            in_specs=[
                pl.BlockSpec((block_b, S, D), lambda b, k: (b, 0, 0)),    # x (resident over k)
                pl.BlockSpec((D, 3 * Dp), lambda b, k: (0, 0)),           # fused W^T
                pl.BlockSpec((1, 3 * Dp), lambda b, k: (0, 0)),           # fused bias
            ],
            out_specs=[
                pl.BlockSpec((block_b, S, Dp), lambda b, k: (b, 0, 0)),   # accumulator output
                pl.BlockSpec((block_b, S, block_k), lambda b, k: (b, 0, k)),
            ],
            scratch_shapes=scratch_shapes,
        ),
        compiler_params=pltpu.CompilerParams(
            dimension_semantics=("parallel", "arbitrary"),
            vmem_limit_bytes=vmem_limit,
        ),
    )(x, w_qkv, b_qkv)

    out = out_pad if Dp == D else out_pad[..., :D]
    return out, attn


def self_attention(x, wq, bq, wk, bk, wv, bv, *, block_b=None, block_k=None):
    """One-shot API matching the PyTorch module.  For repeated calls with the
    same weights, hoist prepare_qkv_params out and call self_attention_fused."""
    w_qkv, b_qkv = prepare_qkv_params(wq, bq, wk, bk, wv, bv, dtype=x.dtype)
    return self_attention_fused(x, w_qkv, b_qkv, block_b=block_b, block_k=block_k)


def _reference(x, wq, bq, wk, bk, wv, bv):
    q = x @ wq.T + bq
    k = x @ wk.T + bk
    v = x @ wv.T + bv
    scores = jnp.einsum("bsd,btd->bst", q, k) / math.sqrt(x.shape[-1])
    weights = jax.nn.softmax(scores, axis=-2)
    return jnp.einsum("bst,btd->bsd", weights, v), weights


if __name__ == "__main__":
    B, S, D = 2, 8, 32   # batch, seq, feature_dim

    key = jax.random.PRNGKey(0)
    kx, kq, kbq, kk, kbk, kv, kbv = jax.random.split(key, 7)

    x = jax.random.normal(kx, (B, S, D), dtype=jnp.float32)

    # Deterministic init mimicking nn.Linear's uniform(-1/sqrt(D), 1/sqrt(D)).
    bound = 1.0 / math.sqrt(D)
    wq = jax.random.uniform(kq, (D, D), jnp.float32, -bound, bound)
    bq = jax.random.uniform(kbq, (D,), jnp.float32, -bound, bound)
    wk = jax.random.uniform(kk, (D, D), jnp.float32, -bound, bound)
    bk = jax.random.uniform(kbk, (D,), jnp.float32, -bound, bound)
    wv = jax.random.uniform(kv, (D, D), jnp.float32, -bound, bound)
    bv = jax.random.uniform(kbv, (D,), jnp.float32, -bound, bound)

    # Fused weight/bias packing hoisted out of the per-call path.
    w_qkv, b_qkv = prepare_qkv_params(wq, bq, wk, bk, wv, bv, dtype=x.dtype)

    out, attn = self_attention_fused(x, w_qkv, b_qkv)
    jax.block_until_ready((out, attn))

    ref_out, ref_attn = _reference(x, wq, bq, wk, bk, wv, bv)
    # The softmax divide is exact now; the residual tolerance only covers MXU
    # matmul precision differences between the kernel and the XLA reference.
    assert jnp.allclose(out, ref_out, atol=5e-3, rtol=5e-3), float(
        jnp.max(jnp.abs(out - ref_out)))
    assert jnp.allclose(attn, ref_attn, atol=5e-3, rtol=5e-3), float(
        jnp.max(jnp.abs(attn - ref_attn)))

    print("KERNEL_OK")
</pallas_src>

<mosaic_0001>
module attributes {stable_mosaic.version = 11 : i64} {
  func.func @_self_attention_kernel(%arg0: i32, %arg1: i32, %arg2: memref<1x8x32xf32, #tpu.memory_space<vmem>>, %arg3: memref<32x384xf32, #tpu.memory_space<vmem>>, %arg4: memref<1x384xf32, #tpu.memory_space<vmem>>, %arg5: memref<1x8x128xf32, #tpu.memory_space<vmem>>, %arg6: memref<1x8x8xf32, #tpu.memory_space<vmem>>) attributes {dimension_semantics = [#tpu.dimension_semantics<parallel>, #tpu.dimension_semantics<arbitrary>], iteration_bounds = array<i64: 2, 1>, scalar_prefetch = 0 : i64, scratch_operands = 0 : i64, tpu.core_type = #tpu.core_type<tc>, window_params = [{transform_indices = @transform_0, window_bounds = array<i64: 1, 8, 32>}, {pipeline_mode = #tpu.pipeline_mode<synchronous>, transform_indices = @transform_1, window_bounds = array<i64: 32, 384>}, {pipeline_mode = #tpu.pipeline_mode<synchronous>, transform_indices = @transform_2, window_bounds = array<i64: 1, 384>}, {transform_indices = @transform_3, window_bounds = array<i64: 1, 8, 128>}, {transform_indices = @transform_4, window_bounds = array<i64: 1, 8, 8>}]} {
    %c0 = arith.constant 0 : index
    %c0_0 = arith.constant 0 : index
    %c0_1 = arith.constant 0 : index
    %0 = vector.load %arg2[%c0, %c0_0, %c0_1] : memref<1x8x32xf32, #tpu.memory_space<vmem>>, vector<1x8x32xf32>
    %1 = vector.shape_cast %0 : vector<1x8x32xf32> to vector<8x32xf32>
    %c0_2 = arith.constant 0 : index
    %c0_3 = arith.constant 0 : index
    %2 = vector.load %arg3[%c0_2, %c0_3] : memref<32x384xf32, #tpu.memory_space<vmem>>, vector<32x384xf32>
    %cst = arith.constant dense<0.000000e+00> : vector<8x384xf32>
    %3 = tpu.matmul %1, %2, %cst {dimension_numbers = #tpu.dot_dimension_numbers<[1], [0], [0], [1], [0, 0, 1, 1], [], []>} : vector<8x32xf32>, vector<32x384xf32>, vector<8x384xf32> -> vector<8x384xf32>
    %c0_4 = arith.constant 0 : index
    %c0_5 = arith.constant 0 : index
    %4 = vector.load %arg4[%c0_4, %c0_5] : memref<1x384xf32, #tpu.memory_space<vmem>>, vector<1x384xf32>
    %5 = vector.broadcast %4 : vector<1x384xf32> to vector<8x384xf32>
    %6 = arith.addf %3, %5 : vector<8x384xf32>
    %7 = vector.extract_strided_slice %6 {offsets = [0, 0], sizes = [8, 128], strides = [1, 1]} : vector<8x384xf32> to vector<8x128xf32>
    %8 = vector.shape_cast %7 : vector<8x128xf32> to vector<1x8x128xf32>
    %9 = vector.extract_strided_slice %6 {offsets = [0, 128], sizes = [8, 128], strides = [1, 1]} : vector<8x384xf32> to vector<8x128xf32>
    %10 = vector.shape_cast %9 : vector<8x128xf32> to vector<1x8x128xf32>
    %11 = vector.extract_strided_slice %6 {offsets = [0, 256], sizes = [8, 128], strides = [1, 1]} : vector<8x384xf32> to vector<8x128xf32>
    %12 = vector.shape_cast %11 : vector<8x128xf32> to vector<1x8x128xf32>
    "tpu.trace_start"() <{level = 10 : i32, message = "bqd,bkd->bqk"}> : () -> ()
    %cst_6 = arith.constant dense<0.000000e+00> : vector<1x8x8xf32>
    %13 = tpu.matmul %8, %10, %cst_6 {dimension_numbers = #tpu.dot_dimension_numbers<[2], [2], [1], [1], [0, 0, 0, 1, 1, 1], [0], [0]>} : vector<1x8x128xf32>, vector<1x8x128xf32>, vector<1x8x8xf32> -> vector<1x8x8xf32>
    "tpu.trace_stop"() : () -> ()
    %cst_7 = arith.constant dense<0xFF800000> : vector<1x8xf32>
    %14 = vector.multi_reduction <maximumf>, %13, %cst_7 [1] : vector<1x8x8xf32> to vector<1x8xf32>
    %15 = vector.shape_cast %14 : vector<1x8xf32> to vector<1x1x8xf32>
    %16 = vector.broadcast %15 : vector<1x1x8xf32> to vector<1x8x8xf32>
    %17 = arith.subf %13, %16 : vector<1x8x8xf32>
    %18 = math.exp %17 : vector<1x8x8xf32>
    %cst_8 = arith.constant dense<0.000000e+00> : vector<1x8xf32>
    %19 = vector.multi_reduction <add>, %18, %cst_8 [1] : vector<1x8x8xf32> to vector<1x8xf32>
    %20 = vector.shape_cast %19 : vector<1x8xf32> to vector<1x1x8xf32>
    %21 = vector.broadcast %20 : vector<1x1x8xf32> to vector<1x8x8xf32>
    %22 = arith.divf %18, %21 : vector<1x8x8xf32>
    %c0_9 = arith.constant 0 : index
    %c0_10 = arith.constant 0 : index
    %c0_11 = arith.constant 0 : index
    %23 = vector.load %arg6[%c0_9, %c0_10, %c0_11] : memref<1x8x8xf32, #tpu.memory_space<vmem>>, vector<1x8x8xf32>
    tpu.vector_store %arg6[%c0_9, %c0_10, %c0_11], %22 {strides = array<i32>} : memref<1x8x8xf32, #tpu.memory_space<vmem>>, vector<1x8x8xf32>,
    "tpu.trace_start"() <{level = 10 : i32, message = "bqk,bkd->bqd"}> : () -> ()
    %cst_12 = arith.constant dense<0.000000e+00> : vector<1x8x128xf32>
    %24 = tpu.matmul %22, %12, %cst_12 {dimension_numbers = #tpu.dot_dimension_numbers<[2], [1], [1], [2], [0, 0, 0, 1, 1, 2], [0], [0]>} : vector<1x8x8xf32>, vector<1x8x128xf32>, vector<1x8x128xf32> -> vector<1x8x128xf32>
    "tpu.trace_stop"() : () -> ()
    %c0_13 = arith.constant 0 : index
    %c0_14 = arith.constant 0 : index
    %c0_15 = arith.constant 0 : index
    %25 = vector.load %arg5[%c0_13, %c0_14, %c0_15] : memref<1x8x128xf32, #tpu.memory_space<vmem>>, vector<1x8x128xf32>
    tpu.vector_store %arg5[%c0_13, %c0_14, %c0_15], %24 {strides = array<i32>} : memref<1x8x128xf32, #tpu.memory_space<vmem>>, vector<1x8x128xf32>,
    return
  }
  func.func @transform_0(%arg0: i32, %arg1: i32) -> (i32, i32, i32) {
    %c0_i32 = arith.constant 0 : i32
    %c0_i32_0 = arith.constant 0 : i32
    %c0_i32_1 = arith.constant 0 : i32
    return %arg0, %c0_i32, %c0_i32_0 : i32, i32, i32
  }
  func.func @transform_1(%arg0: i32, %arg1: i32) -> (i32, i32) {
    %c0_i32 = arith.constant 0 : i32
    %c0_i32_0 = arith.constant 0 : i32
    %c0_i32_1 = arith.constant 0 : i32
    return %c0_i32, %c0_i32_0 : i32, i32
  }
  func.func @transform_2(%arg0: i32, %arg1: i32) -> (i32, i32) {
    %c0_i32 = arith.constant 0 : i32
    %c0_i32_0 = arith.constant 0 : i32
    %c0_i32_1 = arith.constant 0 : i32
    return %c0_i32, %c0_i32_0 : i32, i32
  }
  func.func @transform_3(%arg0: i32, %arg1: i32) -> (i32, i32, i32) {
    %c0_i32 = arith.constant 0 : i32
    %c0_i32_0 = arith.constant 0 : i32
    %c0_i32_1 = arith.constant 0 : i32
    return %arg0, %c0_i32, %c0_i32_0 : i32, i32, i32
  }
  func.func @transform_4(%arg0: i32, %arg1: i32) -> (i32, i32, i32) {
    %c0_i32 = arith.constant 0 : i32
    %c0_i32_0 = arith.constant 0 : i32
    return %arg0, %c0_i32, %arg1 : i32, i32, i32
  }
}

</mosaic_0001>

<llo_original>
// kernel: tpu_custom_call.1
$region0: #{tpu_custom_call.1}
  #allocation0 [shape = 'u32[]', space=smem, size = 0x4, offset = 0x4, fixed_abs, tag = 'smem constant byte address 0x4 - core index']
  #allocation1 [shape = 'u32[144,128]{1,0:T(1,128)}', space=vmem, size = 0x12000, scoped, tag = 'internal scratch']
  %s0 = inlined_call_operand.hbm [shape: f32[2,8,32], index: 0, kind: input, shape index: {}]
  %s1 = inlined_call_operand.hbm [shape: f32[32,384], index: 1, kind: input, shape index: {}]
  %s2 = inlined_call_operand.vmem [shape: f32[1,384], index: 2, kind: input, shape index: {}]
  %s3 = inlined_call_operand.hbm [shape: f32[2,8,128], index: 3, kind: output, shape index: {0}]
  %s4 = inlined_call_operand.hbm [shape: f32[2,8,8], index: 4, kind: output, shape index: {1}]
  %5 = xla_tuple %s3, %s4
  %s6 = sld [smem:[#allocation0]]
  $region61: #{tpu_custom_call.1} parent=0
    _
  %s8 = ssub.s32 1, %s6
  %s9 = scalar_select 0, %s8, %s6
  $region1: #{tpu_custom_call.1} parent=0
    #allocation2 [shape = 'u8[8192]{0}', space=vmem, size = 0x2000, scoped, tag = 'input window, operand 0']
    #allocation3 [shape = 's32[2]{0}', space=sflag, size = 0x8, scoped, tag = 'scoped memory for tpu_custom_call.1']
    #allocation4 [shape = 's32[2]{0}', space=sflag, size = 0x8, scoped, tag = 'scoped memory for tpu_custom_call.1']
    #allocation5 [shape = 'u8[49152]{0}', space=vmem, size = 0xc000, scoped, tag = 'input window, operand 1, single buffered']
    #allocation6 [shape = 's32[1]{0}', space=sflag, size = 0x4, scoped, tag = 'scoped memory for tpu_custom_call.1']
    #allocation7 [shape = 'u8[8192]{0}', space=vmem, size = 0x2000, scoped, tag = 'output window, operand 0']
    #allocation8 [shape = 'u8[8192]{0}', space=vmem, size = 0x2000, scoped, tag = 'output window, operand 1']
    #allocation9 [shape = 's32[2]{0}', space=sflag, size = 0x8, scoped, tag = 'scoped memory for tpu_custom_call.1']
    %10 = vsyncpa [#allocation3], 0
    %s11 = scalar_lea.sflag [#allocation3], 1
    %12 = vsyncpa %s11, 0
    %13 = vsyncpa [#allocation6], 0
    %14 = vsyncpa [#allocation4], 0
    %s15 = scalar_lea.sflag [#allocation4], 1
    %16 = vsyncpa %s15, 0
    %17 = vsyncpa [#allocation9], 0
    %s18 = scalar_lea.sflag [#allocation9], 1
    %19 = vsyncpa %s18, 0
    loop: start=0, step=1, limit=4
    $region2: #{tpu_custom_call.1} parent=1 // loop_pre_header
      _
    $region3: #{tpu_custom_call.1} parent=1 // loop_header
      %s21 = sphi 0, %s25
      %p22 = scmp.ge.s32.totalorder %s21, 4
      %s28 = sphi 0, %s40
      %s29 = sphi 0, %s36
      %s30 = sphi 0, %s28
      %s31 = sphi 0, %s29
      %s32 = sphi 0, %s30
      %s33 = sphi 0, %s31
      %s43 = sphi 0, %s45
      %s46 = sphi 0, %s43
      %s47 = sphi 0, %s46
      %s63 = sphi 0, %s47
      %s67 = sphi 0, %s67
      %s69 = sphi 0, %s67
      %s70 = sphi 0, %s69
      %s84 = sphi 0, %s70
      %s88 = sphi 0, %s88
      %s90 = sphi 0, %s88
      %s91 = sphi 0, %s90
      %s105 = sphi 0, %s91
      %s111 = sphi 0, %s113
      %s114 = sphi 0, %s111
      %s115 = sphi 0, %s114
      %s131 = sphi 0, %s115
      %s139 = sphi 0, %s141
      %s142 = sphi 0, %s139
      %s143 = sphi 0, %s142
      %s159 = sphi 0, %s143
    $region4: #{tpu_custom_call.1} parent=1 // loop_header_branch
      %24 = sbr.rel (%p22) target = $region8
    $region5: #{tpu_custom_call.1} parent=1 // loop_body
      %s26 = ssub.s32 %s21, 1
      %s27 = ssub.s32 %s21, 2
      %s34 = sadd.s32 1, %s29
      %p35 = scmp.ge.s32.totalorder %s34, 1
      %s36 = scalar_select %p35, 0, %s34
      %s37 = sadd.s32 1, %s28
      %s38 = scalar_select %p35, %s37, %s28
      %p39 = scmp.ge.s32.totalorder %s38, 2
      %s40 = scalar_select %p39, 0, %s38
      %s41 = ssub.s32 %s28, %s40
      %p42 = scmp.eq.s32.totalorder %s41, 0
      %s44 = sadd.s32 %s43, 1
      %s45 = scalar_select %p42, %s43, %s44
      %p48 = pneg %p42
      %p49 = scmp.eq.s32.totalorder %s21, 1
      %p50 = por %p48, %p49
      %p51 = scmp.ne.s32.totalorder %s43, %s46
      %p52 = scmp.eq.s32.totalorder %s21, 0
      %p53 = por %p51, %p52
      %p54 = scmp.ne.s32.totalorder %s43, %s46
      %p55 = scmp.eq.s32.totalorder %s26, 1
      %p56 = por %p54, %p55
      %p57 = scmp.ne.s32.totalorder %s46, %s47
      %p58 = scmp.eq.s32.totalorder %s26, 0
      %p59 = por %p57, %p58
      %p60 = scmp.ne.s32.totalorder %s46, %s47
      %p61 = scmp.eq.s32.totalorder %s27, 1
      %p62 = por %p60, %p61
      %p64 = scmp.ne.s32.totalorder %s47, %s63
      %p65 = scmp.eq.s32.totalorder %s27, 0
      %p66 = por %p64, %p65
      %s68 = sadd.s32 %s67, 1
      %p71 = scmp.eq.s32.totalorder %s21, 1
      %p72 = scmp.ne.s32.totalorder %s67, %s69
      %p73 = scmp.eq.s32.totalorder %s21, 0
      %p74 = por %p72, %p73
      %p75 = scmp.ne.s32.totalorder %s67, %s69
      %p76 = scmp.eq.s32.totalorder %s26, 1
      %p77 = por %p75, %p76
      %p78 = scmp.ne.s32.totalorder %s69, %s70
      %p79 = scmp.eq.s32.totalorder %s26, 0
      %p80 = por %p78, %p79
      %p81 = scmp.ne.s32.totalorder %s69, %s70
      %p82 = scmp.eq.s32.totalorder %s27, 1
      %p83 = por %p81, %p82
      %p85 = scmp.ne.s32.totalorder %s70, %s84
      %p86 = scmp.eq.s32.totalorder %s27, 0
      %p87 = por %p85, %p86
      %s89 = sadd.s32 %s88, 1
      %p92 = scmp.eq.s32.totalorder %s21, 1
      %p93 = scmp.ne.s32.totalorder %s88, %s90
      %p94 = scmp.eq.s32.totalorder %s21, 0
      %p95 = por %p93, %p94
      %p96 = scmp.ne.s32.totalorder %s88, %s90
      %p97 = scmp.eq.s32.totalorder %s26, 1
      %p98 = por %p96, %p97
      %p99 = scmp.ne.s32.totalorder %s90, %s91
      %p100 = scmp.eq.s32.totalorder %s26, 0
      %p101 = por %p99, %p100
      %p102 = scmp.ne.s32.totalorder %s90, %s91
      %p103 = scmp.eq.s32.totalorder %s27, 1
      %p104 = por %p102, %p103
      %p106 = scmp.ne.s32.totalorder %s91, %s105
      %p107 = scmp.eq.s32.totalorder %s27, 0
      %p108 = por %p106, %p107
      %s109 = ssub.s32 %s28, %s40
      %p110 = scmp.eq.s32.totalorder %s109, 0
      %s112 = sadd.s32 %s111, 1
      %s113 = scalar_select %p110, %s111, %s112
      %p116 = pneg %p110
      %p117 = scmp.eq.s32.totalorder %s21, 1
      %p118 = por %p116, %p117
      %p119 = scmp.ne.s32.totalorder %s111, %s114
      %p120 = scmp.eq.s32.totalorder %s21, 0
      %p121 = por %p119, %p120
      %p122 = scmp.ne.s32.totalorder %s111, %s114
      %p123 = scmp.eq.s32.totalorder %s26, 1
      %p124 = por %p122, %p123
      %p125 = scmp.ne.s32.totalorder %s114, %s115
      %p126 = scmp.eq.s32.totalorder %s26, 0
      %p127 = por %p125, %p126
      %p128 = scmp.ne.s32.totalorder %s114, %s115
      %p129 = scmp.eq.s32.totalorder %s27, 1
      %p130 = por %p128, %p129
      %p132 = scmp.ne.s32.totalorder %s115, %s131
      %p133 = scmp.eq.s32.totalorder %s27, 0
      %p134 = por %p132, %p133
      %s135 = ssub.s32 %s28, %s40
      %s136 = ssub.s32 %s29, %s36
      %s137 = sor.u32 %s135, %s136
      %p138 = scmp.eq.s32.totalorder %s137, 0
      %s140 = sadd.s32 %s139, 1
      %s141 = scalar_select %p138, %s139, %s140
      %p144 = pneg %p138
      %p145 = scmp.eq.s32.totalorder %s21, 1
      %p146 = por %p144, %p145
      %p147 = scmp.ne.s32.totalorder %s139, %s142
      %p148 = scmp.eq.s32.totalorder %s21, 0
      %p149 = por %p147, %p148
      %p150 = scmp.ne.s32.totalorder %s139, %s142
      %p151 = scmp.eq.s32.totalorder %s26, 1
      %p152 = por %p150, %p151
      %p153 = scmp.ne.s32.totalorder %s142, %s143
      %p154 = scmp.eq.s32.totalorder %s26, 0
      %p155 = por %p153, %p154
      %p156 = scmp.ne.s32.totalorder %s142, %s143
      %p157 = scmp.eq.s32.totalorder %s27, 1
      %p158 = por %p156, %p157
      %p160 = scmp.ne.s32.totalorder %s143, %s159
      %p161 = scmp.eq.s32.totalorder %s27, 0
      %p162 = por %p160, %p161
      %p163 = scmp.le.s32.totalorder 1, %s21
      %p164 = scmp.lt.s32.totalorder %s21, 3
      %p165 = pnand %p163, %p164
      %p166 = pneg %p165
      // Predicated region
      $region9: #{tpu_custom_call.1} parent=5 // pred_check
        _
      $region10: #{tpu_custom_call.1} parent=5 // pred_check_branch
        %168 = sbr.rel (%p165) target = $region12
      $region11: #{tpu_custom_call.1} parent=5 // pred_region
        %s169 = ssub.s32 %s21, 1
        // Predicated region
        $region13: #{tpu_custom_call.1} parent=11 // pred_check
          %p170 = pneg %p80
        $region14: #{tpu_custom_call.1} parent=11 // pred_check_branch
          %172 = sbr.rel (%p170) target = $region16
        $region15: #{tpu_custom_call.1} parent=11 // pred_region
          %s174 = ssub.s32 1536, 1536
          %175 = vsyncadd [#allocation6], %s174
          %s176 = sshll.u32 [#allocation5], 4
          %s177 = int_to_ptr.vmem [resolvable:$true] %s176
          %182 = dma.hbm_to_vmem [thread:$0]  %s1, 1536, %s177, [#allocation6], 384, 384, 24
        $region16: #{tpu_custom_call.1} parent=11 // pred_fallthru
          _
        // Predicated region
        $region17: #{tpu_custom_call.1} parent=11 // pred_check
          %p183 = pneg %p101
        $region18: #{tpu_custom_call.1} parent=11 // pred_check_branch
          %185 = sbr.rel (%p183) target = $region20
        $region19: #{tpu_custom_call.1} parent=11 // pred_region
          _
        $region20: #{tpu_custom_call.1} parent=11 // pred_fallthru
          _
      $region12: #{tpu_custom_call.1} parent=5 // pred_fallthru
        _
      %p186 = scmp.lt.s32.totalorder %s21, 2
      // Predicated region
      $region21: #{tpu_custom_call.1} parent=5 // pred_check
        %p187 = pneg %p186
      $region22: #{tpu_custom_call.1} parent=5 // pred_check_branch
        %189 = sbr.rel (%p187) target = $region24
      $region23: #{tpu_custom_call.1} parent=5 // pred_region
        // Predicated region
        $region25: #{tpu_custom_call.1} parent=23 // pred_check
          %p190 = pneg %p53
        $region26: #{tpu_custom_call.1} parent=23 // pred_check_branch
          %192 = sbr.rel (%p190) target = $region28
        $region27: #{tpu_custom_call.1} parent=23 // pred_region
          %s193 = sand.u32 %s43, 1
          %s194 = scalar_lea.sflag [#allocation3], %s193
          %s195 = sand.u32 %s43, 1
          %s196 = smul.addr %s195, 8
          %s197 = scalar_lea.vmem [#allocation2], %s196
          %s199 = ssub.s32 128, 128
          %200 = vsyncadd %s194, %s199
          %s201 = smul.addr %s28, 128
          %s202 = scalar_lea.hbm %s0, %s201
          %s204 = sshll.u32 %s197, 4
          %s205 = int_to_ptr.vmem [resolvable:$true] %s204
          %207 = dma.hbm_to_vmem [thread:$0]  %s202, 128, %s205, %s194
        $region28: #{tpu_custom_call.1} parent=23 // pred_fallthru
          _
      $region24: #{tpu_custom_call.1} parent=5 // pred_fallthru
        _
      %p208 = scmp.le.s32.totalorder 1, %s21
      %p209 = scmp.lt.s32.totalorder %s21, 3
      %p210 = pnand %p208, %p209
      %p211 = pneg %p210
      // Predicated region
      $region29: #{tpu_custom_call.1} parent=5 // pred_check
        _
      $region30: #{tpu_custom_call.1} parent=5 // pred_check_branch
        %213 = sbr.rel (%p210) target = $region32
      $region31: #{tpu_custom_call.1} parent=5 // pred_region
        %s214 = ssub.s32 %s21, 1
        %s215 = sand.u32 %s46, 1
        %s216 = scalar_lea.sflag [#allocation3], %s215
        %s217 = sand.u32 %s46, 1
        %s218 = smul.addr %s217, 8
        %s219 = scalar_lea.vmem [#allocation2], %s218
        // Predicated region
        $region33: #{tpu_custom_call.1} parent=31 // pred_check
          %p220 = pneg %p59
        $region34: #{tpu_custom_call.1} parent=31 // pred_check_branch
          %222 = sbr.rel (%p220) target = $region36
        $region35: #{tpu_custom_call.1} parent=31 // pred_region
          %223 = dma.done %s216, 128
        $region36: #{tpu_custom_call.1} parent=31 // pred_fallthru
          _
        // Predicated region
        $region37: #{tpu_custom_call.1} parent=31 // pred_check
          %p224 = pneg %p80
        $region38: #{tpu_custom_call.1} parent=31 // pred_check_branch
          %226 = sbr.rel (%p224) target = $region40
        $region39: #{tpu_custom_call.1} parent=31 // pred_region
          %227 = dma.done [#allocation6], 1536
        $region40: #{tpu_custom_call.1} parent=31 // pred_fallthru
          _
        %s228 = sand.u32 %s46, 1
        %s229 = scalar_lea.sflag [#allocation3], %s228
        %s230 = sand.u32 %s46, 1
        %s231 = smul.addr %s230, 8
        %s232 = scalar_lea.vmem [#allocation2], %s231
        %p233 = pneg %p59
        %p234 = pneg %p56
        %p235 = pneg %p80
        %p236 = pneg %p77
        %p237 = pneg %p101
        %p238 = pneg %p98
        %p239 = pneg %p127
        %p240 = pneg %p124
        %s241 = sand.u32 %s114, 1
        %s242 = scalar_lea.sflag [#allocation4], %s241
        %s243 = sand.u32 %s114, 1
        %s244 = smul.addr %s243, 8
        %s245 = scalar_lea.vmem [#allocation7], %s244
        %p246 = pneg %p155
        %p247 = pneg %p152
        %s248 = sand.u32 %s142, 1
        %s249 = scalar_lea.sflag [#allocation9], %s248
        %s250 = sand.u32 %s142, 1
        %s251 = smul.addr %s250, 8
        %s252 = scalar_lea.vmem [#allocation8], %s251
        %v253 = vld [vmem:[%s219] sm:$0xff]
        %v254 = vld [vmem:[#allocation5] sm:$0xff]
        %v255 = vld [vmem:[#allocation5 + $0x8] sm:$0xff]
        %v256 = vld [vmem:[#allocation5 + $0x10] sm:$0xff]
        %v257 = vld [vmem:[#allocation5 + $0x18] sm:$0xff]
        %v258 = vld [vmem:[#allocation5 + $0x20] sm:$0xff]
        %v259 = vld [vmem:[#allocation5 + $0x28] sm:$0xff]
        %v260 = vld [vmem:[#allocation5 + $0x30] sm:$0xff]
        %v261 = vld [vmem:[#allocation5 + $0x38] sm:$0xff]
        %v262 = vld [vmem:[#allocation5 + $0x40] sm:$0xff]
        %v263 = vld [vmem:[#allocation5 + $0x48] sm:$0xff]
        %v264 = vld [vmem:[#allocation5 + $0x50] sm:$0xff]
        %v265 = vld [vmem:[#allocation5 + $0x58] sm:$0xff]
        %v266 = vld [vmem:[%s2] sm:$0x7]
        %v268 = vlaneseq
        %v269 = vshrl.u32 %v268, 7
        %v270 = vsub.s32 0, %v269
        %v271 = vrot.slane %v266, %v270
        %v272 = vlaneseq
        %v273 = vshrl.u32 %v272, 7
        %v274 = vsub.s32 1, %v273
        %v275 = vrot.slane %v266, %v274
        %v276 = vlaneseq
        %v277 = vshrl.u32 %v276, 7
        %v278 = vsub.s32 2, %v277
        %v279 = vrot.slane %v266, %v278
        %vm283 = vcmask 261120
        %v285 = vsel %vm283, %v253, 0
        %287 = vmatprep.subr.mxu0 0.0
        %288 = vmatpush1.msra.mxu0 0.0
        %289 = vmatprep.subr.mxu0 0.0
        %290 = vmatpush1.msra.mxu0 0.0
        %291 = vmatprep.subr.mxu0 0.0
        %292 = vmatpush1.msra.mxu0 0.0
        %293 = vmatprep.subr.mxu0 0.0
        %294 = vmatpush1.msra.mxu0 0.0
        %295 = vmatprep.subr.mxu0 0.0
        %296 = vmatpush1.msra.mxu0 0.0
        %297 = vmatprep.subr.mxu0 0.0
        %298 = vmatpush1.msra.mxu0 0.0
        %299 = vmatprep.subr.mxu0 0.0
        %300 = vmatpush1.msra.mxu0 0.0
        %301 = vmatprep.subr.mxu0 0.0
        %302 = vmatpush1.msra.mxu0 0.0
        %303 = vmatprep.subr.mxu0 0.0
        %304 = vmatpush1.msra.mxu0 0.0
        %305 = vmatprep.subr.mxu0 0.0
        %306 = vmatpush1.msra.mxu0 0.0
        %307 = vmatprep.subr.mxu0 0.0
        %308 = vmatpush1.msra.mxu0 0.0
        %309 = vmatprep.subr.mxu0 0.0
        %310 = vmatpush1.msra.mxu0 0.0
        %311 = vmatprep.subr.mxu0 %v264
        %312 = vmatpush1.msra.mxu0 %v263
        %313 = vmatprep.subr.mxu0 %v261
        %314 = vmatpush1.msra.mxu0 %v260
        %315 = vmatprep.subr.mxu0 %v258
        %316 = vmatpush1.msra.mxu0 %v257
        %317 = vmatprep.subr.mxu0 %v255
        %318 = vmatpush1.msra.mxu0 %v254
        %319 = vmatprep.subr.mxu0 0.0
        %320 = vmatpush2.msra.mxu0 0.0
        %321 = vmatprep.subr.mxu0 0.0
        %322 = vmatpush2.msra.mxu0 0.0
        %323 = vmatprep.subr.mxu0 0.0
        %324 = vmatpush2.msra.mxu0 0.0
        %325 = vmatprep.subr.mxu0 0.0
        %326 = vmatpush2.msra.mxu0 0.0
        %327 = vmatprep.subr.mxu0 0.0
        %328 = vmatpush2.msra.mxu0 0.0
        %329 = vmatprep.subr.mxu0 0.0
        %330 = vmatpush2.msra.mxu0 0.0
        %331 = vmatprep.subr.mxu0 0.0
        %332 = vmatpush2.msra.mxu0 0.0
        %333 = vmatprep.subr.mxu0 0.0
        %334 = vmatpush2.msra.mxu0 0.0
        %335 = vmatprep.subr.mxu0 0.0
        %336 = vmatpush2.msra.mxu0 0.0
        %337 = vmatprep.subr.mxu0 0.0
        %338 = vmatpush2.msra.mxu0 0.0
        %339 = vmatprep.subr.mxu0 0.0
        %340 = vmatpush2.msra.mxu0 0.0
        %341 = vmatprep.subr.mxu0 0.0
        %342 = vmatpush2.msra.mxu0 0.0
        %343 = vmatprep.subr.mxu0 0.0
        %344 = vmatpush2.msra.mxu0 0.0
        %345 = vmatprep.subr.mxu0 0.0
        %346 = vmatpush2.msra.mxu0 0.0
        %347 = vmatprep.subr.mxu0 0.0
        %348 = vmatpush2.msra.mxu0 0.0
        %349 = vmatprep.subr.mxu0 0.0
        %350 = vmatpush2.msra.mxu0 0.0
        %351 = vmatprep.mubr.f32.mxu0 0.0
        %352 = vmatmul.mubr.f32.gmra.mxu0 %v285
        %v353 = vpop.f32.mrf.mxu0
        %v354 = vadd.f32 %v271, %v353
        %v355 = vpop.f32.mrf.mxu0
        %v356 = vadd.f32 %v275, %v355
        %357 = vdwg.mxu0
        %358 = vmatprep.subr.mxu0 0.0
        %359 = vmatpush1.msra.mxu0 0.0
        %360 = vmatprep.subr.mxu0 0.0
        %361 = vmatpush1.msra.mxu0 0.0
        %362 = vmatprep.subr.mxu0 0.0
        %363 = vmatpush1.msra.mxu0 0.0
        %364 = vmatprep.subr.mxu0 0.0
        %365 = vmatpush1.msra.mxu0 0.0
        %366 = vmatprep.subr.mxu0 0.0
        %367 = vmatpush1.msra.mxu0 0.0
        %368 = vmatprep.subr.mxu0 0.0
        %369 = vmatpush1.msra.mxu0 0.0
        %370 = vmatprep.subr.mxu0 0.0
        %371 = vmatpush1.msra.mxu0 0.0
        %372 = vmatprep.subr.mxu0 0.0
        %373 = vmatpush1.msra.mxu0 0.0
        %374 = vmatprep.subr.mxu0 0.0
        %375 = vmatpush1.msra.mxu0 0.0
        %376 = vmatprep.subr.mxu0 0.0
        %377 = vmatpush1.msra.mxu0 0.0
        %378 = vmatprep.subr.mxu0 0.0
        %379 = vmatpush1.msra.mxu0 0.0
        %380 = vmatprep.subr.mxu0 0.0
        %381 = vmatpush1.msra.mxu0 0.0
        %382 = vmatprep.subr.mxu0 0.0
        %383 = vmatpush1.msra.mxu0 %v265
        %384 = vmatprep.subr.mxu0 0.0
        %385 = vmatpush1.msra.mxu0 %v262
        %386 = vmatprep.subr.mxu0 0.0
        %387 = vmatpush1.msra.mxu0 %v259
        %388 = vmatprep.subr.mxu0 0.0
        %389 = vmatpush1.msra.mxu0 %v256
        %390 = vmatprep.subr.mxu0 0.0
        %391 = vmatpush2.msra.mxu0 0.0
        %392 = vmatprep.subr.mxu0 0.0
        %393 = vmatpush2.msra.mxu0 0.0
        %394 = vmatprep.subr.mxu0 0.0
        %395 = vmatpush2.msra.mxu0 0.0
        %396 = vmatprep.subr.mxu0 0.0
        %397 = vmatpush2.msra.mxu0 0.0
        %398 = vmatprep.subr.mxu0 0.0
        %399 = vmatpush2.msra.mxu0 0.0
        %400 = vmatprep.subr.mxu0 0.0
        %401 = vmatpush2.msra.mxu0 0.0
        %402 = vmatprep.subr.mxu0 0.0
        %403 = vmatpush2.msra.mxu0 0.0
        %404 = vmatprep.subr.mxu0 0.0
        %405 = vmatpush2.msra.mxu0 0.0
        %406 = vmatprep.subr.mxu0 0.0
        %407 = vmatpush2.msra.mxu0 0.0
        %408 = vmatprep.subr.mxu0 0.0
        %409 = vmatpush2.msra.mxu0 0.0
        %410 = vmatprep.subr.mxu0 0.0
        %411 = vmatpush2.msra.mxu0 0.0
        %412 = vmatprep.subr.mxu0 0.0
        %413 = vmatpush2.msra.mxu0 0.0
        %414 = vmatprep.subr.mxu0 0.0
        %415 = vmatpush2.msra.mxu0 0.0
        %416 = vmatprep.subr.mxu0 0.0
        %417 = vmatpush2.msra.mxu0 0.0
        %418 = vmatprep.subr.mxu0 0.0
        %419 = vmatpush2.msra.mxu0 0.0
        %420 = vmatprep.subr.mxu0 0.0
        %421 = vmatpush2.msra.mxu0 0.0
        %422 = vmatprep.mubr.f32.mxu0 0.0
        %423 = vmatmul.mubr.f32.gmra.mxu0 %v285
        %v424 = vpop.f32.mrf.mxu0
        %v425 = vadd.f32 %v279, %v424
        %v426 = vpop.f32.mrf.mxu0
        %427 = vdwg.mxu0
        %428 = vmatprep.subr.mxu0 0.0
        %429 = vmatpush1.xpose.msra.mxu0 0.0
        %430 = vmatprep.subr.mxu0 0.0
        %431 = vmatpush1.xpose.msra.mxu0 0.0
        %432 = vmatprep.subr.mxu0 0.0
        %433 = vmatpush1.xpose.msra.mxu0 0.0
        %434 = vmatprep.subr.mxu0 0.0
        %435 = vmatpush1.xpose.msra.mxu0 0.0
        %436 = vmatprep.subr.mxu0 0.0
        %437 = vmatpush1.xpose.msra.mxu0 0.0
        %438 = vmatprep.subr.mxu0 0.0
        %439 = vmatpush1.xpose.msra.mxu0 0.0
        %440 = vmatprep.subr.mxu0 0.0
        %441 = vmatpush1.xpose.msra.mxu0 0.0
        %442 = vmatprep.subr.mxu0 0.0
        %443 = vmatpush1.xpose.msra.mxu0 0.0
        %444 = vmatprep.subr.mxu0 0.0
        %445 = vmatpush1.xpose.msra.mxu0 0.0
        %446 = vmatprep.subr.mxu0 0.0
        %447 = vmatpush1.xpose.msra.mxu0 0.0
        %448 = vmatprep.subr.mxu0 0.0
        %449 = vmatpush1.xpose.msra.mxu0 0.0
        %450 = vmatprep.subr.mxu0 0.0
        %451 = vmatpush1.xpose.msra.mxu0 0.0
        %452 = vmatprep.subr.mxu0 0.0
        %453 = vmatpush1.xpose.msra.mxu0 0.0
        %454 = vmatprep.subr.mxu0 0.0
        %455 = vmatpush1.xpose.msra.mxu0 0.0
        %456 = vmatprep.subr.mxu0 0.0
        %457 = vmatpush1.xpose.msra.mxu0 0.0
        %458 = vmatprep.subr.mxu0 0.0
        %459 = vmatpush1.xpose.msra.mxu0 %v356
        %460 = vmatprep.subr.mxu0 0.0
        %461 = vmatpush2.xpose.msra.mxu0 0.0
        %462 = vmatprep.subr.mxu0 0.0
        %463 = vmatpush2.xpose.msra.mxu0 0.0
        %464 = vmatprep.subr.mxu0 0.0
        %465 = vmatpush2.xpose.msra.mxu0 0.0
        %466 = vmatprep.subr.mxu0 0.0
        %467 = vmatpush2.xpose.msra.mxu0 0.0
        %468 = vmatprep.subr.mxu0 0.0
        %469 = vmatpush2.xpose.msra.mxu0 0.0
        %470 = vmatprep.subr.mxu0 0.0
        %471 = vmatpush2.xpose.msra.mxu0 0.0
        %472 = vmatprep.subr.mxu0 0.0
        %473 = vmatpush2.xpose.msra.mxu0 0.0
        %474 = vmatprep.subr.mxu0 0.0
        %475 = vmatpush2.xpose.msra.mxu0 0.0
        %476 = vmatprep.subr.mxu0 0.0
        %477 = vmatpush2.xpose.msra.mxu0 0.0
        %478 = vmatprep.subr.mxu0 0.0
        %479 = vmatpush2.xpose.msra.mxu0 0.0
        %480 = vmatprep.subr.mxu0 0.0
        %481 = vmatpush2.xpose.msra.mxu0 0.0
        %482 = vmatprep.subr.mxu0 0.0
        %483 = vmatpush2.xpose.msra.mxu0 0.0
        %484 = vmatprep.subr.mxu0 0.0
        %485 = vmatpush2.xpose.msra.mxu0 0.0
        %486 = vmatprep.subr.mxu0 0.0
        %487 = vmatpush2.xpose.msra.mxu0 0.0
        %488 = vmatprep.subr.mxu0 0.0
        %489 = vmatpush2.xpose.msra.mxu0 0.0
        %490 = vmatprep.subr.mxu0 0.0
        %491 = vmatpush2.xpose.msra.mxu0 0.0
        %492 = vmatprep.mubr.f32.mxu0 0.0
        %493 = vmatmul.mubr.f32.gmra.mxu0 %v354
        %v494 = vpop.f32.mrf.mxu0
        %v495 = vadd.f32 0.0, %v494
        %v496 = vpop.f32.mrf.mxu0
        %497 = vdwg.mxu0
        %vm498 = vcmask 64512
        %v499 = vsel %vm498, %v495, -inf
        %v500 = vrot.slane %v499, 4
        %v501 = vmax.f32 %v499, %v500
        %v502 = vrot.slane %v501, 2
        %v503 = vmax.f32 %v501, %v502
        %v504 = vrot.slane %v503, 1
        %v505 = vmax.f32 %v503, %v504
        %v506 = vsub.f32 %v495, %v505
        %v507 = vmul.f32 %v506, 1.442695
        %v508 = vpow.pop %v507
        %v509 = vsel %vm498, %v508, 0.0
        %v510 = vrot.slane %v509, 4
        %v511 = vadd.f32 %v509, %v510
        %v512 = vrot.slane %v511, 2
        %v513 = vadd.f32 %v511, %v512
        %v514 = vrot.slane %v513, 1
        %v515 = vadd.f32 %v513, %v514
        %v516 = vrcp.pop %v515
        %v517 = vmul.f32 %v508, %v516
        %518 = vst.msk [vmem:[%s252] sm:$0xff] %vm498, %v517
        %v520 = vsel %vm498, %v517, 0
        %522 = vmatprep.subr.mxu0 0.0
        %523 = vmatpush1.msra.mxu0 0.0
        %524 = vmatprep.subr.mxu0 0.0
        %525 = vmatpush1.msra.mxu0 0.0
        %526 = vmatprep.subr.mxu0 0.0
        %527 = vmatpush1.msra.mxu0 0.0
        %528 = vmatprep.subr.mxu0 0.0
        %529 = vmatpush1.msra.mxu0 0.0
        %530 = vmatprep.subr.mxu0 0.0
        %531 = vmatpush1.msra.mxu0 0.0
        %532 = vmatprep.subr.mxu0 0.0
        %533 = vmatpush1.msra.mxu0 0.0
        %534 = vmatprep.subr.mxu0 0.0
        %535 = vmatpush1.msra.mxu0 0.0
        %536 = vmatprep.subr.mxu0 0.0
        %537 = vmatpush1.msra.mxu0 0.0
        %538 = vmatprep.subr.mxu0 0.0
        %539 = vmatpush1.msra.mxu0 0.0
        %540 = vmatprep.subr.mxu0 0.0
        %541 = vmatpush1.msra.mxu0 0.0
        %542 = vmatprep.subr.mxu0 0.0
        %543 = vmatpush1.msra.mxu0 0.0
        %544 = vmatprep.subr.mxu0 0.0
        %545 = vmatpush1.msra.mxu0 0.0
        %546 = vmatprep.subr.mxu0 0.0
        %547 = vmatpush1.msra.mxu0 0.0
        %548 = vmatprep.subr.mxu0 0.0
        %549 = vmatpush1.msra.mxu0 0.0
        %550 = vmatprep.subr.mxu0 0.0
        %551 = vmatpush1.msra.mxu0 0.0
        %552 = vmatprep.subr.mxu0 0.0
        %553 = vmatpush1.msra.mxu0 %v425
        %554 = vmatprep.subr.mxu0 0.0
        %555 = vmatpush2.msra.mxu0 0.0
        %556 = vmatprep.subr.mxu0 0.0
        %557 = vmatpush2.msra.mxu0 0.0
        %558 = vmatprep.subr.mxu0 0.0
        %559 = vmatpush2.msra.mxu0 0.0
        %560 = vmatprep.subr.mxu0 0.0
        %561 = vmatpush2.msra.mxu0 0.0
        %562 = vmatprep.subr.mxu0 0.0
        %563 = vmatpush2.msra.mxu0 0.0
        %564 = vmatprep.subr.mxu0 0.0
        %565 = vmatpush2.msra.mxu0 0.0
        %566 = vmatprep.subr.mxu0 0.0
        %567 = vmatpush2.msra.mxu0 0.0
        %568 = vmatprep.subr.mxu0 0.0
        %569 = vmatpush2.msra.mxu0 0.0
        %570 = vmatprep.subr.mxu0 0.0
        %571 = vmatpush2.msra.mxu0 0.0
        %572 = vmatprep.subr.mxu0 0.0
        %573 = vmatpush2.msra.mxu0 0.0
        %574 = vmatprep.subr.mxu0 0.0
        %575 = vmatpush2.msra.mxu0 0.0
        %576 = vmatprep.subr.mxu0 0.0
        %577 = vmatpush2.msra.mxu0 0.0
        %578 = vmatprep.subr.mxu0 0.0
        %579 = vmatpush2.msra.mxu0 0.0
        %580 = vmatprep.subr.mxu0 0.0
        %581 = vmatpush2.msra.mxu0 0.0
        %582 = vmatprep.subr.mxu0 0.0
        %583 = vmatpush2.msra.mxu0 0.0
        %584 = vmatprep.subr.mxu0 0.0
        %585 = vmatpush2.msra.mxu0 0.0
        %586 = vmatprep.mubr.f32.mxu0 0.0
        %587 = vmatmul.mubr.f32.gmra.mxu0 %v520
        %v588 = vpop.f32.mrf.mxu0
        %v589 = vadd.f32 0.0, %v588
        %v590 = vpop.f32.mrf.mxu0
        %591 = vdwg.mxu0
        %592 = vst [vmem:[%s245] sm:$0xff] %v589
        %s593 = sand.u32 %s114, 1
        %s594 = scalar_lea.sflag [#allocation4], %s593
        %s595 = sand.u32 %s114, 1
        %s596 = smul.addr %s595, 8
        %s597 = scalar_lea.vmem [#allocation7], %s596
        %s598 = sand.u32 %s142, 1
        %s599 = scalar_lea.sflag [#allocation9], %s598
        %s600 = sand.u32 %s142, 1
        %s601 = smul.addr %s600, 8
        %s602 = scalar_lea.vmem [#allocation8], %s601
        // Predicated region
        $region41: #{tpu_custom_call.1} parent=31 // pred_check
          %p603 = pneg %p124
        $region42: #{tpu_custom_call.1} parent=31 // pred_check_branch
          %605 = sbr.rel (%p603) target = $region44
        $region43: #{tpu_custom_call.1} parent=31 // pred_region
          %s607 = ssub.s32 128, 128
          %608 = vsyncadd %s594, %s607
          %s609 = smul.addr %s30, 128
          %s610 = scalar_lea.hbm %s3, %s609
          %s612 = sshll.u32 %s597, 4
          %s613 = int_to_ptr.vmem [resolvable:$true] %s612
          %615 = dma.vmem_to_hbm [thread:$0]  %s613, 128, %s610, %s594
        $region44: #{tpu_custom_call.1} parent=31 // pred_fallthru
          _
        // Predicated region
        $region45: #{tpu_custom_call.1} parent=31 // pred_check
          %p616 = pneg %p152
        $region46: #{tpu_custom_call.1} parent=31 // pred_check_branch
          %618 = sbr.rel (%p616) target = $region48
        $region47: #{tpu_custom_call.1} parent=31 // pred_region
          %s620 = ssub.s32 128, 128
          %621 = vsyncadd %s599, %s620
          %s622 = sadd.s32 %s31, %s30
          %s623 = smul.addr %s622, 128
          %s624 = scalar_lea.hbm %s4, %s623
          %s626 = sshll.u32 %s602, 4
          %s627 = int_to_ptr.vmem [resolvable:$true] %s626
          %629 = dma.vmem_to_hbm [thread:$0]  %s627, 128, %s624, %s599
        $region48: #{tpu_custom_call.1} parent=31 // pred_fallthru
          _
      $region32: #{tpu_custom_call.1} parent=5 // pred_fallthru
        _
      %p630 = scmp.le.s32.totalorder 2, %s21
      // Predicated region
      $region49: #{tpu_custom_call.1} parent=5 // pred_check
        %p631 = pneg %p630
      $region50: #{tpu_custom_call.1} parent=5 // pred_check_branch
        %633 = sbr.rel (%p631) target = $region52
      $region51: #{tpu_custom_call.1} parent=5 // pred_region
        %s634 = ssub.s32 %s21, 2
        // Predicated region
        $region53: #{tpu_custom_call.1} parent=51 // pred_check
          %p635 = pneg %p130
        $region54: #{tpu_custom_call.1} parent=51 // pred_check_branch
          %637 = sbr.rel (%p635) target = $region56
        $region55: #{tpu_custom_call.1} parent=51 // pred_region
          %s638 = sand.u32 %s115, 1
          %s639 = scalar_lea.sflag [#allocation4], %s638
          %s640 = sand.u32 %s115, 1
          %s641 = smul.addr %s640, 8
          %s642 = scalar_lea.vmem [#allocation7], %s641
          %643 = dma.done %s639, 128
        $region56: #{tpu_custom_call.1} parent=51 // pred_fallthru
          _
        // Predicated region
        $region57: #{tpu_custom_call.1} parent=51 // pred_check
          %p644 = pneg %p158
        $region58: #{tpu_custom_call.1} parent=51 // pred_check_branch
          %646 = sbr.rel (%p644) target = $region60
        $region59: #{tpu_custom_call.1} parent=51 // pred_region
          %s647 = sand.u32 %s143, 1
          %s648 = scalar_lea.sflag [#allocation9], %s647
          %s649 = sand.u32 %s143, 1
          %s650 = smul.addr %s649, 8
          %s651 = scalar_lea.vmem [#allocation8], %s650
          %652 = dma.done %s648, 128
        $region60: #{tpu_custom_call.1} parent=51 // pred_fallthru
          _
      $region52: #{tpu_custom_call.1} parent=5 // pred_fallthru
        _
    $region6: #{tpu_custom_call.1} parent=1 // loop_footer
      %s25 = sadd.s32 1, %s21
    $region7: #{tpu_custom_call.1} parent=1 // loop_footer_branch
      %20 = sbr.rel target = $region3
    $region8: #{tpu_custom_call.1} parent=1 // loop_exit
      _
    %653 = vsyncpa [#allocation3], 1
    %s654 = scalar_lea.sflag [#allocation3], 1
    %655 = vsyncpa %s654, 1
    %656 = vsyncpa [#allocation6], 1
    %657 = vsyncpa [#allocation4], 1
    %s658 = scalar_lea.sflag [#allocation4], 1
    %659 = vsyncpa %s658, 1
    %660 = vsyncpa [#allocation9], 1
    %s661 = scalar_lea.sflag [#allocation9], 1
    %662 = vsyncpa %s661, 1

</llo_original>
